<compile_context>
chip_gen: v7x
topology: tpu7x:2x2x1
jax: 0.10.0
libtpu: 0.0.40
codegen_flags: <defaults>
</compile_context>

<pallas_src>
import jax
import jax.numpy as jnp
from jax.experimental import pallas as pl
from jax.experimental.pallas import tpu as pltpu


def _tensorsum_kernel(x_ref, k_ref, mct_ref, o_ref):
    """One grid step = one batch b.

    x_ref:   (1, C, H*W)        input, lane-dense on H*W
    k_ref:   (T, H*W, Ho*Wo)    fused kron(m_h, m_w) factors
    mct_ref: (T, Co, C)         channel factors, pre-transposed
    o_ref:   (1, Co, Ho*Wo)     output, lane-dense on Ho*Wo (== NCHW flat)
    """
    x = x_ref[0]                       # (C, HW)
    T = k_ref.shape[0]                 # static
    Co = mct_ref.shape[1]
    HWo = k_ref.shape[2]

    acc = jnp.zeros((Co, HWo), jnp.float32)
    # Static unrolled loop over the T (=3) terms; matrices stay resident in VMEM.
    for t in range(T):
        y = jnp.dot(x, k_ref[t], preferred_element_type=jnp.float32)        # (C, HWo)
        acc = acc + jnp.dot(mct_ref[t], y, preferred_element_type=jnp.float32)  # (Co, HWo)

    o_ref[0] = acc.astype(o_ref.dtype)


def tensor_sum_efficient(x, m_w, m_h, m_c):
    """x: (B, C, H, W) f32; m_w: (T, W, Wo); m_h: (T, H, Ho); m_c: (T, C, Co).

    Returns (B, Co, Ho, Wo) f32 -- same as the PyTorch module's output.
    """
    B, C, H, W = x.shape
    T, _, Wo = m_w.shape
    _, _, Ho = m_h.shape
    _, _, Co = m_c.shape
    HW = H * W
    HWo = Ho * Wo

    # Lane-dense input layout (contiguous reshape, no relayout).
    x_flat = x.reshape(B, C, HW)

    # Fused (H,W)-mode factor: K[t, h*W + w, ho*Wo + wo] = m_h[t,h,ho] * m_w[t,w,wo]
    k_hw = jnp.einsum('thy,twz->thwyz', m_h, m_w).reshape(T, HW, HWo)

    # Pre-transposed channel factor so the kernel's last matmul is (Co,C)@(C,HWo).
    mc_t = jnp.transpose(m_c, (0, 2, 1))  # (T, Co, C)

    out_flat = pl.pallas_call(
        _tensorsum_kernel,
        out_shape=jax.ShapeDtypeStruct((B, Co, HWo), jnp.float32),
        grid_spec=pltpu.PrefetchScalarGridSpec(
            num_scalar_prefetch=0,
            grid=(B,),
            in_specs=[
                pl.BlockSpec((1, C, HW), lambda b: (b, 0, 0)),
                pl.BlockSpec((T, HW, HWo), lambda b: (0, 0, 0)),
                pl.BlockSpec((T, Co, C), lambda b: (0, 0, 0)),
            ],
            out_specs=pl.BlockSpec((1, Co, HWo), lambda b: (b, 0, 0)),
        ),
        compiler_params=pltpu.CompilerParams(
            dimension_semantics=("parallel",)),
    )(x_flat, k_hw, mc_t)

    # (B, Co, Ho*Wo) -> (B, Co, Ho, Wo): pure reshape, already NCHW ordered.
    return out_flat.reshape(B, Co, Ho, Wo)


def _reference(x, m_w, m_h, m_c):
    # Pure-JAX reference of the same contraction (for verification).
    return jnp.einsum('bchw,tcx,thy,twz->bxyz', x, m_c, m_h, m_w)


if __name__ == "__main__":
    # Module config: in_shape = [C, H, W] = [4, 16, 16], out_shape same,
    # T = 3, init_temperature = 1.0, drop_block_p = 0.0 (Identity).
    B, C, H, W = 2, 4, 16, 16
    Co, Ho, Wo = 4, 16, 16
    T = 3
    N = 3
    init_temperature = 1.0
    scale_factor = init_temperature ** (1.0 / N)

    key = jax.random.PRNGKey(0)
    kx, kw, kh, kc = jax.random.split(key, 4)

    x = jax.random.normal(kx, (B, C, H, W), dtype=jnp.float32)

    # matrices (PyTorch init, reversed order): [0] -> W-mode, [1] -> H-mode, [2] -> C-mode
    m_w = jax.random.normal(kw, (T, W, Wo), jnp.float32) / (scale_factor * jnp.sqrt(float(Wo)))
    m_h = jax.random.normal(kh, (T, H, Ho), jnp.float32) / (scale_factor * jnp.sqrt(float(Ho)))
    m_c = jax.random.normal(kc, (T, C, Co), jnp.float32) / (scale_factor * jnp.sqrt(float(Co)))

    out = tensor_sum_efficient(x, m_w, m_h, m_c)
    out = jax.block_until_ready(out)

    ref = _reference(x, m_w, m_h, m_c)
    assert out.shape == (B, Co, Ho, Wo)
    assert jnp.allclose(out, ref, atol=2e-4, rtol=2e-4)

    print("KERNEL_OK")
</pallas_src>

<mosaic_0001>
module attributes {stable_mosaic.version = 11 : i64} {
  func.func @_tensorsum_kernel(%arg0: i32, %arg1: memref<1x4x256xf32, #tpu.memory_space<vmem>>, %arg2: memref<3x256x256xf32, #tpu.memory_space<vmem>>, %arg3: memref<3x4x4xf32, #tpu.memory_space<vmem>>, %arg4: memref<1x4x256xf32, #tpu.memory_space<vmem>>) attributes {dimension_semantics = [#tpu.dimension_semantics<parallel>], iteration_bounds = array<i64: 2>, scalar_prefetch = 0 : i64, scratch_operands = 0 : i64, tpu.core_type = #tpu.core_type<tc>, window_params = [{transform_indices = @transform_0, window_bounds = array<i64: 1, 4, 256>}, {pipeline_mode = #tpu.pipeline_mode<synchronous>, transform_indices = @transform_1, window_bounds = array<i64: 3, 256, 256>}, {pipeline_mode = #tpu.pipeline_mode<synchronous>, transform_indices = @transform_2, window_bounds = array<i64: 3, 4, 4>}, {transform_indices = @transform_3, window_bounds = array<i64: 1, 4, 256>}]} {
    %c0 = arith.constant 0 : index
    %c0_0 = arith.constant 0 : index
    %c0_1 = arith.constant 0 : index
    %0 = vector.load %arg1[%c0, %c0_0, %c0_1] : memref<1x4x256xf32, #tpu.memory_space<vmem>>, vector<1x4x256xf32>
    %1 = vector.shape_cast %0 : vector<1x4x256xf32> to vector<4x256xf32>
    %cst = arith.constant 0.000000e+00 : f32
    %2 = vector.broadcast %cst : f32 to vector<4x256xf32>
    %c0_2 = arith.constant 0 : index
    %c0_3 = arith.constant 0 : index
    %c0_4 = arith.constant 0 : index
    %3 = vector.load %arg2[%c0_2, %c0_3, %c0_4] : memref<3x256x256xf32, #tpu.memory_space<vmem>>, vector<1x256x256xf32>
    %4 = vector.shape_cast %3 : vector<1x256x256xf32> to vector<256x256xf32>
    %cst_5 = arith.constant dense<0.000000e+00> : vector<4x256xf32>
    %5 = tpu.matmul %1, %4, %cst_5 {dimension_numbers = #tpu.dot_dimension_numbers<[1], [0], [0], [1], [0, 0, 1, 1], [], []>} : vector<4x256xf32>, vector<256x256xf32>, vector<4x256xf32> -> vector<4x256xf32>
    %c0_6 = arith.constant 0 : index
    %c0_7 = arith.constant 0 : index
    %c0_8 = arith.constant 0 : index
    %6 = vector.load %arg3[%c0_6, %c0_7, %c0_8] : memref<3x4x4xf32, #tpu.memory_space<vmem>>, vector<1x4x4xf32>
    %7 = vector.shape_cast %6 : vector<1x4x4xf32> to vector<4x4xf32>
    %cst_9 = arith.constant dense<0.000000e+00> : vector<4x256xf32>
    %8 = tpu.matmul %7, %5, %cst_9 {dimension_numbers = #tpu.dot_dimension_numbers<[1], [0], [0], [1], [0, 0, 1, 1], [], []>} : vector<4x4xf32>, vector<4x256xf32>, vector<4x256xf32> -> vector<4x256xf32>
    %9 = arith.addf %2, %8 : vector<4x256xf32>
    %c1 = arith.constant 1 : index
    %c0_10 = arith.constant 0 : index
    %c0_11 = arith.constant 0 : index
    %10 = vector.load %arg2[%c1, %c0_10, %c0_11] : memref<3x256x256xf32, #tpu.memory_space<vmem>>, vector<1x256x256xf32>
    %11 = vector.shape_cast %10 : vector<1x256x256xf32> to vector<256x256xf32>
    %cst_12 = arith.constant dense<0.000000e+00> : vector<4x256xf32>
    %12 = tpu.matmul %1, %11, %cst_12 {dimension_numbers = #tpu.dot_dimension_numbers<[1], [0], [0], [1], [0, 0, 1, 1], [], []>} : vector<4x256xf32>, vector<256x256xf32>, vector<4x256xf32> -> vector<4x256xf32>
    %c1_13 = arith.constant 1 : index
    %c0_14 = arith.constant 0 : index
    %c0_15 = arith.constant 0 : index
    %13 = vector.load %arg3[%c1_13, %c0_14, %c0_15] : memref<3x4x4xf32, #tpu.memory_space<vmem>>, vector<1x4x4xf32>
    %14 = vector.shape_cast %13 : vector<1x4x4xf32> to vector<4x4xf32>
    %cst_16 = arith.constant dense<0.000000e+00> : vector<4x256xf32>
    %15 = tpu.matmul %14, %12, %cst_16 {dimension_numbers = #tpu.dot_dimension_numbers<[1], [0], [0], [1], [0, 0, 1, 1], [], []>} : vector<4x4xf32>, vector<4x256xf32>, vector<4x256xf32> -> vector<4x256xf32>
    %16 = arith.addf %9, %15 : vector<4x256xf32>
    %c2 = arith.constant 2 : index
    %c0_17 = arith.constant 0 : index
    %c0_18 = arith.constant 0 : index
    %17 = vector.load %arg2[%c2, %c0_17, %c0_18] : memref<3x256x256xf32, #tpu.memory_space<vmem>>, vector<1x256x256xf32>
    %18 = vector.shape_cast %17 : vector<1x256x256xf32> to vector<256x256xf32>
    %cst_19 = arith.constant dense<0.000000e+00> : vector<4x256xf32>
    %19 = tpu.matmul %1, %18, %cst_19 {dimension_numbers = #tpu.dot_dimension_numbers<[1], [0], [0], [1], [0, 0, 1, 1], [], []>} : vector<4x256xf32>, vector<256x256xf32>, vector<4x256xf32> -> vector<4x256xf32>
    %c2_20 = arith.constant 2 : index
    %c0_21 = arith.constant 0 : index
    %c0_22 = arith.constant 0 : index
    %20 = vector.load %arg3[%c2_20, %c0_21, %c0_22] : memref<3x4x4xf32, #tpu.memory_space<vmem>>, vector<1x4x4xf32>
    %21 = vector.shape_cast %20 : vector<1x4x4xf32> to vector<4x4xf32>
    %cst_23 = arith.constant dense<0.000000e+00> : vector<4x256xf32>
    %22 = tpu.matmul %21, %19, %cst_23 {dimension_numbers = #tpu.dot_dimension_numbers<[1], [0], [0], [1], [0, 0, 1, 1], [], []>} : vector<4x4xf32>, vector<4x256xf32>, vector<4x256xf32> -> vector<4x256xf32>
    %23 = arith.addf %16, %22 : vector<4x256xf32>
    %c0_24 = arith.constant 0 : index
    %c0_25 = arith.constant 0 : index
    %c0_26 = arith.constant 0 : index
    %24 = vector.load %arg4[%c0_24, %c0_25, %c0_26] : memref<1x4x256xf32, #tpu.memory_space<vmem>>, vector<1x4x256xf32>
    %25 = vector.shape_cast %24 : vector<1x4x256xf32> to vector<4x256xf32>
    %26 = vector.shape_cast %23 : vector<4x256xf32> to vector<1x4x256xf32>
    tpu.vector_store %arg4[%c0_24, %c0_25, %c0_26], %26 {strides = array<i32>} : memref<1x4x256xf32, #tpu.memory_space<vmem>>, vector<1x4x256xf32>,
    return
  }
  func.func @transform_0(%arg0: i32) -> (i32, i32, i32) {
    %c0_i32 = arith.constant 0 : i32
    %c0_i32_0 = arith.constant 0 : i32
    %c0_i32_1 = arith.constant 0 : i32
    return %arg0, %c0_i32, %c0_i32_0 : i32, i32, i32
  }
  func.func @transform_1(%arg0: i32) -> (i32, i32, i32) {
    %c0_i32 = arith.constant 0 : i32
    %c0_i32_0 = arith.constant 0 : i32
    %c0_i32_1 = arith.constant 0 : i32
    %c0_i32_2 = arith.constant 0 : i32
    return %c0_i32, %c0_i32_0, %c0_i32_1 : i32, i32, i32
  }
  func.func @transform_2(%arg0: i32) -> (i32, i32, i32) {
    %c0_i32 = arith.constant 0 : i32
    %c0_i32_0 = arith.constant 0 : i32
    %c0_i32_1 = arith.constant 0 : i32
    %c0_i32_2 = arith.constant 0 : i32
    return %c0_i32, %c0_i32_0, %c0_i32_1 : i32, i32, i32
  }
  func.func @transform_3(%arg0: i32) -> (i32, i32, i32) {
    %c0_i32 = arith.constant 0 : i32
    %c0_i32_0 = arith.constant 0 : i32
    %c0_i32_1 = arith.constant 0 : i32
    return %arg0, %c0_i32, %c0_i32_0 : i32, i32, i32
  }
}

</mosaic_0001>

<llo_original>
// kernel: tpu_custom_call.1
$region0: #{tpu_custom_call.1}
  #allocation0 [shape = 'u32[]', space=smem, size = 0x4, offset = 0x4, fixed_abs, tag = 'smem constant byte address 0x4 - core index']
  #allocation1 [shape = 'u32[144,128]{1,0:T(1,128)}', space=vmem, size = 0x12000, scoped, tag = 'internal scratch']
  %s0 = inlined_call_operand.hbm [shape: f32[2,4,256], index: 0, kind: input, shape index: {}]
  %s1 = inlined_call_operand.hbm [shape: f32[3,256,256], index: 1, kind: input, shape index: {}]
  %s2 = inlined_call_operand.hbm [shape: f32[3,4,4], index: 2, kind: input, shape index: {}]
  %s3 = inlined_call_operand.hbm [shape: f32[2,4,256], index: 3, kind: output, shape index: {}]
  %s4 = sld [smem:[#allocation0]]
  $region57: #{tpu_custom_call.1} parent=0
    _
  %s6 = ssub.s32 1, %s4
  %s7 = scalar_select 0, %s6, %s4
  $region1: #{tpu_custom_call.1} parent=0
    #allocation2 [shape = 'u8[8192]{0}', space=vmem, size = 0x2000, scoped, tag = 'input window, operand 0']
    #allocation3 [shape = 's32[2]{0}', space=sflag, size = 0x8, scoped, tag = 'scoped memory for tpu_custom_call.1']
    #allocation4 [shape = 's32[2]{0}', space=sflag, size = 0x8, scoped, tag = 'scoped memory for tpu_custom_call.1']
    #allocation5 [shape = 'u8[786432]{0}', space=vmem, size = 0xc0000, scoped, tag = 'input window, operand 1, single buffered']
    #allocation6 [shape = 's32[1]{0}', space=sflag, size = 0x4, scoped, tag = 'scoped memory for tpu_custom_call.1']
    #allocation7 [shape = 'u8[6144]{0}', space=vmem, size = 0x1800, scoped, tag = 'input window, operand 2, single buffered']
    #allocation8 [shape = 'u8[8192]{0}', space=vmem, size = 0x2000, scoped, tag = 'output window, operand 0']
    %8 = vsyncpa [#allocation3], 0
    %s9 = scalar_lea.sflag [#allocation3], 1
    %10 = vsyncpa %s9, 0
    %11 = vsyncpa [#allocation6], 0
    %12 = vsyncpa [#allocation4], 0
    %s13 = scalar_lea.sflag [#allocation4], 1
    %14 = vsyncpa %s13, 0
    loop: start=0, step=1, limit=4
    $region2: #{tpu_custom_call.1} parent=1 // loop_pre_header
      _
    $region3: #{tpu_custom_call.1} parent=1 // loop_header
      %s16 = sphi 0, %s20
      %p17 = scmp.ge.s32.totalorder %s16, 4
      %s26 = sphi 0, %s28
      %s29 = sphi 0, %s26
      %s30 = sphi 0, %s29
      %s46 = sphi 0, %s30
      %s50 = sphi 0, %s50
      %s52 = sphi 0, %s50
      %s53 = sphi 0, %s52
      %s67 = sphi 0, %s53
      %s71 = sphi 0, %s71
      %s73 = sphi 0, %s71
      %s74 = sphi 0, %s73
      %s88 = sphi 0, %s74
      %s94 = sphi 0, %s96
      %s97 = sphi 0, %s94
      %s98 = sphi 0, %s97
      %s114 = sphi 0, %s98
    $region4: #{tpu_custom_call.1} parent=1 // loop_header_branch
      %19 = sbr.rel (%p17) target = $region8
    $region5: #{tpu_custom_call.1} parent=1 // loop_body
      %s21 = ssub.s32 %s16, 1
      %s22 = ssub.s32 %s16, 2
      %s23 = sadd.s32 %s16, 1
      %s24 = ssub.s32 %s16, %s23
      %p25 = scmp.eq.s32.totalorder %s24, 0
      %s27 = sadd.s32 %s26, 1
      %s28 = scalar_select %p25, %s26, %s27
      %p31 = pneg %p25
      %p32 = scmp.eq.s32.totalorder %s16, 1
      %p33 = por %p31, %p32
      %p34 = scmp.ne.s32.totalorder %s26, %s29
      %p35 = scmp.eq.s32.totalorder %s16, 0
      %p36 = por %p34, %p35
      %p37 = scmp.ne.s32.totalorder %s26, %s29
      %p38 = scmp.eq.s32.totalorder %s21, 1
      %p39 = por %p37, %p38
      %p40 = scmp.ne.s32.totalorder %s29, %s30
      %p41 = scmp.eq.s32.totalorder %s21, 0
      %p42 = por %p40, %p41
      %p43 = scmp.ne.s32.totalorder %s29, %s30
      %p44 = scmp.eq.s32.totalorder %s22, 1
      %p45 = por %p43, %p44
      %p47 = scmp.ne.s32.totalorder %s30, %s46
      %p48 = scmp.eq.s32.totalorder %s22, 0
      %p49 = por %p47, %p48
      %s51 = sadd.s32 %s50, 1
      %p54 = scmp.eq.s32.totalorder %s16, 1
      %p55 = scmp.ne.s32.totalorder %s50, %s52
      %p56 = scmp.eq.s32.totalorder %s16, 0
      %p57 = por %p55, %p56
      %p58 = scmp.ne.s32.totalorder %s50, %s52
      %p59 = scmp.eq.s32.totalorder %s21, 1
      %p60 = por %p58, %p59
      %p61 = scmp.ne.s32.totalorder %s52, %s53
      %p62 = scmp.eq.s32.totalorder %s21, 0
      %p63 = por %p61, %p62
      %p64 = scmp.ne.s32.totalorder %s52, %s53
      %p65 = scmp.eq.s32.totalorder %s22, 1
      %p66 = por %p64, %p65
      %p68 = scmp.ne.s32.totalorder %s53, %s67
      %p69 = scmp.eq.s32.totalorder %s22, 0
      %p70 = por %p68, %p69
      %s72 = sadd.s32 %s71, 1
      %p75 = scmp.eq.s32.totalorder %s16, 1
      %p76 = scmp.ne.s32.totalorder %s71, %s73
      %p77 = scmp.eq.s32.totalorder %s16, 0
      %p78 = por %p76, %p77
      %p79 = scmp.ne.s32.totalorder %s71, %s73
      %p80 = scmp.eq.s32.totalorder %s21, 1
      %p81 = por %p79, %p80
      %p82 = scmp.ne.s32.totalorder %s73, %s74
      %p83 = scmp.eq.s32.totalorder %s21, 0
      %p84 = por %p82, %p83
      %p85 = scmp.ne.s32.totalorder %s73, %s74
      %p86 = scmp.eq.s32.totalorder %s22, 1
      %p87 = por %p85, %p86
      %p89 = scmp.ne.s32.totalorder %s74, %s88
      %p90 = scmp.eq.s32.totalorder %s22, 0
      %p91 = por %p89, %p90
      %s92 = ssub.s32 %s16, %s23
      %p93 = scmp.eq.s32.totalorder %s92, 0
      %s95 = sadd.s32 %s94, 1
      %s96 = scalar_select %p93, %s94, %s95
      %p99 = pneg %p93
      %p100 = scmp.eq.s32.totalorder %s16, 1
      %p101 = por %p99, %p100
      %p102 = scmp.ne.s32.totalorder %s94, %s97
      %p103 = scmp.eq.s32.totalorder %s16, 0
      %p104 = por %p102, %p103
      %p105 = scmp.ne.s32.totalorder %s94, %s97
      %p106 = scmp.eq.s32.totalorder %s21, 1
      %p107 = por %p105, %p106
      %p108 = scmp.ne.s32.totalorder %s97, %s98
      %p109 = scmp.eq.s32.totalorder %s21, 0
      %p110 = por %p108, %p109
      %p111 = scmp.ne.s32.totalorder %s97, %s98
      %p112 = scmp.eq.s32.totalorder %s22, 1
      %p113 = por %p111, %p112
      %p115 = scmp.ne.s32.totalorder %s98, %s114
      %p116 = scmp.eq.s32.totalorder %s22, 0
      %p117 = por %p115, %p116
      %p118 = scmp.le.s32.totalorder 1, %s16
      %p119 = scmp.lt.s32.totalorder %s16, 3
      %p120 = pnand %p118, %p119
      %p121 = pneg %p120
      // Predicated region
      $region9: #{tpu_custom_call.1} parent=5 // pred_check
        _
      $region10: #{tpu_custom_call.1} parent=5 // pred_check_branch
        %123 = sbr.rel (%p120) target = $region12
      $region11: #{tpu_custom_call.1} parent=5 // pred_region
        %s124 = ssub.s32 %s16, 1
        // Predicated region
        $region13: #{tpu_custom_call.1} parent=11 // pred_check
          %p125 = pneg %p63
        $region14: #{tpu_custom_call.1} parent=11 // pred_check_branch
          %127 = sbr.rel (%p125) target = $region16
        $region15: #{tpu_custom_call.1} parent=11 // pred_region
          %s129 = ssub.s32 24576, 24576
          %130 = vsyncadd [#allocation6], %s129
          %s131 = sshll.u32 [#allocation5], 4
          %s132 = int_to_ptr.vmem [resolvable:$true] %s131
          %137 = dma.hbm_to_vmem [thread:$0]  %s1, 24576, %s132, [#allocation6], 256, 256, 16
        $region16: #{tpu_custom_call.1} parent=11 // pred_fallthru
          _
        // Predicated region
        $region17: #{tpu_custom_call.1} parent=11 // pred_check
          %p138 = pneg %p84
        $region18: #{tpu_custom_call.1} parent=11 // pred_check_branch
          %140 = sbr.rel (%p138) target = $region20
        $region19: #{tpu_custom_call.1} parent=11 // pred_region
          %s142 = ssub.s32 192, 192
          %143 = vsyncadd [#allocation6], %s142
          %s144 = sshll.u32 [#allocation7], 4
          %s145 = int_to_ptr.vmem [resolvable:$true] %s144
          %150 = dma.hbm_to_vmem [thread:$0]  %s2, 192, %s145, [#allocation6], 64, 64, 4
        $region20: #{tpu_custom_call.1} parent=11 // pred_fallthru
          _
      $region12: #{tpu_custom_call.1} parent=5 // pred_fallthru
        _
      %p151 = scmp.lt.s32.totalorder %s16, 2
      // Predicated region
      $region21: #{tpu_custom_call.1} parent=5 // pred_check
        %p152 = pneg %p151
      $region22: #{tpu_custom_call.1} parent=5 // pred_check_branch
        %154 = sbr.rel (%p152) target = $region24
      $region23: #{tpu_custom_call.1} parent=5 // pred_region
        // Predicated region
        $region25: #{tpu_custom_call.1} parent=23 // pred_check
          %p155 = pneg %p36
        $region26: #{tpu_custom_call.1} parent=23 // pred_check_branch
          %157 = sbr.rel (%p155) target = $region28
        $region27: #{tpu_custom_call.1} parent=23 // pred_region
          %s158 = sand.u32 %s26, 1
          %s159 = scalar_lea.sflag [#allocation3], %s158
          %s160 = sand.u32 %s26, 1
          %s161 = smul.addr %s160, 8
          %s162 = scalar_lea.vmem [#allocation2], %s161
          %s164 = ssub.s32 128, 128
          %165 = vsyncadd %s159, %s164
          %s166 = smul.addr %s16, 2
          %s167 = smul.addr %s166, 64
          %s168 = scalar_lea.hbm %s0, %s167
          %s170 = sshll.u32 %s162, 4
          %s171 = int_to_ptr.vmem [resolvable:$true] %s170
          %173 = dma.hbm_to_vmem [thread:$0]  %s168, 128, %s171, %s159
        $region28: #{tpu_custom_call.1} parent=23 // pred_fallthru
          _
      $region24: #{tpu_custom_call.1} parent=5 // pred_fallthru
        _
      %p174 = scmp.le.s32.totalorder 1, %s16
      %p175 = scmp.lt.s32.totalorder %s16, 3
      %p176 = pnand %p174, %p175
      %p177 = pneg %p176
      // Predicated region
      $region29: #{tpu_custom_call.1} parent=5 // pred_check
        _
      $region30: #{tpu_custom_call.1} parent=5 // pred_check_branch
        %179 = sbr.rel (%p176) target = $region32
      $region31: #{tpu_custom_call.1} parent=5 // pred_region
        %s180 = ssub.s32 %s16, 1
        %s181 = sand.u32 %s29, 1
        %s182 = scalar_lea.sflag [#allocation3], %s181
        %s183 = sand.u32 %s29, 1
        %s184 = smul.addr %s183, 8
        %s185 = scalar_lea.vmem [#allocation2], %s184
        // Predicated region
        $region33: #{tpu_custom_call.1} parent=31 // pred_check
          %p186 = pneg %p42
        $region34: #{tpu_custom_call.1} parent=31 // pred_check_branch
          %188 = sbr.rel (%p186) target = $region36
        $region35: #{tpu_custom_call.1} parent=31 // pred_region
          %189 = dma.done %s182, 128
        $region36: #{tpu_custom_call.1} parent=31 // pred_fallthru
          _
        // Predicated region
        $region37: #{tpu_custom_call.1} parent=31 // pred_check
          %p190 = pneg %p63
        $region38: #{tpu_custom_call.1} parent=31 // pred_check_branch
          %192 = sbr.rel (%p190) target = $region40
        $region39: #{tpu_custom_call.1} parent=31 // pred_region
          %193 = dma.done [#allocation6], 24576
        $region40: #{tpu_custom_call.1} parent=31 // pred_fallthru
          _
        // Predicated region
        $region41: #{tpu_custom_call.1} parent=31 // pred_check
          %p194 = pneg %p84
        $region42: #{tpu_custom_call.1} parent=31 // pred_check_branch
          %196 = sbr.rel (%p194) target = $region44
        $region43: #{tpu_custom_call.1} parent=31 // pred_region
          %197 = dma.done [#allocation6], 192
        $region44: #{tpu_custom_call.1} parent=31 // pred_fallthru
          _
        %s198 = sand.u32 %s29, 1
        %s199 = scalar_lea.sflag [#allocation3], %s198
        %s200 = sand.u32 %s29, 1
        %s201 = smul.addr %s200, 8
        %s202 = scalar_lea.vmem [#allocation2], %s201
        %p203 = pneg %p42
        %p204 = pneg %p39
        %p205 = pneg %p63
        %p206 = pneg %p60
        %p207 = pneg %p84
        %p208 = pneg %p81
        %p209 = pneg %p110
        %p210 = pneg %p107
        %s211 = sand.u32 %s97, 1
        %s212 = scalar_lea.sflag [#allocation4], %s211
        %s213 = sand.u32 %s97, 1
        %s214 = smul.addr %s213, 8
        %s215 = scalar_lea.vmem [#allocation8], %s214
        %v216 = vld [vmem:[%s185] sm:$0xff]
        %v217 = vld [vmem:[#allocation5] sm:$0xff]
        %v218 = vld [vmem:[#allocation5 + $0x8] sm:$0xff]
        %v219 = vld [vmem:[#allocation5 + $0x10] sm:$0xff]
        %v220 = vld [vmem:[#allocation5 + $0x18] sm:$0xff]
        %v221 = vld [vmem:[#allocation5 + $0x20] sm:$0xff]
        %v222 = vld [vmem:[#allocation5 + $0x28] sm:$0xff]
        %v223 = vld [vmem:[#allocation5 + $0x30] sm:$0xff]
        %v224 = vld [vmem:[#allocation5 + $0x38] sm:$0xff]
        %v225 = vld [vmem:[#allocation5 + $0x40] sm:$0xff]
        %v226 = vld [vmem:[#allocation5 + $0x48] sm:$0xff]
        %v227 = vld [vmem:[#allocation5 + $0x50] sm:$0xff]
        %v228 = vld [vmem:[#allocation5 + $0x58] sm:$0xff]
        %v229 = vld [vmem:[#allocation5 + $0x60] sm:$0xff]
        %v230 = vld [vmem:[#allocation5 + $0x68] sm:$0xff]
        %v231 = vld [vmem:[#allocation5 + $0x70] sm:$0xff]
        %v232 = vld [vmem:[#allocation5 + $0x78] sm:$0xff]
        %v233 = vld [vmem:[#allocation5 + $0x80] sm:$0xff]
        %v234 = vld [vmem:[#allocation5 + $0x88] sm:$0xff]
        %v235 = vld [vmem:[#allocation5 + $0x90] sm:$0xff]
        %v236 = vld [vmem:[#allocation5 + $0x98] sm:$0xff]
        %v237 = vld [vmem:[#allocation5 + $0xa0] sm:$0xff]
        %v238 = vld [vmem:[#allocation5 + $0xa8] sm:$0xff]
        %v239 = vld [vmem:[#allocation5 + $0xb0] sm:$0xff]
        %v240 = vld [vmem:[#allocation5 + $0xb8] sm:$0xff]
        %v241 = vld [vmem:[#allocation5 + $0xc0] sm:$0xff]
        %v242 = vld [vmem:[#allocation5 + $0xc8] sm:$0xff]
        %v243 = vld [vmem:[#allocation5 + $0xd0] sm:$0xff]
        %v244 = vld [vmem:[#allocation5 + $0xd8] sm:$0xff]
        %v245 = vld [vmem:[#allocation5 + $0xe0] sm:$0xff]
        %v246 = vld [vmem:[#allocation5 + $0xe8] sm:$0xff]
        %v247 = vld [vmem:[#allocation5 + $0xf0] sm:$0xff]
        %v248 = vld [vmem:[#allocation5 + $0xf8] sm:$0xff]
        %v249 = vld [vmem:[#allocation5 + $0x100] sm:$0xff]
        %v250 = vld [vmem:[#allocation5 + $0x108] sm:$0xff]
        %v251 = vld [vmem:[#allocation5 + $0x110] sm:$0xff]
        %v252 = vld [vmem:[#allocation5 + $0x118] sm:$0xff]
        %v253 = vld [vmem:[#allocation5 + $0x120] sm:$0xff]
        %v254 = vld [vmem:[#allocation5 + $0x128] sm:$0xff]
        %v255 = vld [vmem:[#allocation5 + $0x130] sm:$0xff]
        %v256 = vld [vmem:[#allocation5 + $0x138] sm:$0xff]
        %v257 = vld [vmem:[#allocation5 + $0x140] sm:$0xff]
        %v258 = vld [vmem:[#allocation5 + $0x148] sm:$0xff]
        %v259 = vld [vmem:[#allocation5 + $0x150] sm:$0xff]
        %v260 = vld [vmem:[#allocation5 + $0x158] sm:$0xff]
        %v261 = vld [vmem:[#allocation5 + $0x160] sm:$0xff]
        %v262 = vld [vmem:[#allocation5 + $0x168] sm:$0xff]
        %v263 = vld [vmem:[#allocation5 + $0x170] sm:$0xff]
        %v264 = vld [vmem:[#allocation5 + $0x178] sm:$0xff]
        %v265 = vld [vmem:[#allocation5 + $0x180] sm:$0xff]
        %v266 = vld [vmem:[#allocation5 + $0x188] sm:$0xff]
        %v267 = vld [vmem:[#allocation5 + $0x190] sm:$0xff]
        %v268 = vld [vmem:[#allocation5 + $0x198] sm:$0xff]
        %v269 = vld [vmem:[#allocation5 + $0x1a0] sm:$0xff]
        %v270 = vld [vmem:[#allocation5 + $0x1a8] sm:$0xff]
        %v271 = vld [vmem:[#allocation5 + $0x1b0] sm:$0xff]
        %v272 = vld [vmem:[#allocation5 + $0x1b8] sm:$0xff]
        %v273 = vld [vmem:[#allocation5 + $0x1c0] sm:$0xff]
        %v274 = vld [vmem:[#allocation5 + $0x1c8] sm:$0xff]
        %v275 = vld [vmem:[#allocation5 + $0x1d0] sm:$0xff]
        %v276 = vld [vmem:[#allocation5 + $0x1d8] sm:$0xff]
        %v277 = vld [vmem:[#allocation5 + $0x1e0] sm:$0xff]
        %v278 = vld [vmem:[#allocation5 + $0x1e8] sm:$0xff]
        %v279 = vld [vmem:[#allocation5 + $0x1f0] sm:$0xff]
        %v280 = vld [vmem:[#allocation5 + $0x1f8] sm:$0xff]
        %v282 = vcombine.high %v216, %v216
        %284 = vmatprep.subr.mxu0 %v218
        %285 = vmatpush1.msra.mxu0 %v217
        %286 = vmatprep.subr.mxu0 %v220
        %287 = vmatpush1.msra.mxu0 %v219
        %288 = vmatprep.subr.mxu0 %v222
        %289 = vmatpush1.msra.mxu0 %v221
        %290 = vmatprep.subr.mxu0 %v224
        %291 = vmatpush1.msra.mxu0 %v223
        %292 = vmatprep.subr.mxu0 %v226
        %293 = vmatpush1.msra.mxu0 %v225
        %294 = vmatprep.subr.mxu0 %v228
        %295 = vmatpush1.msra.mxu0 %v227
        %296 = vmatprep.subr.mxu0 %v230
        %297 = vmatpush1.msra.mxu0 %v229
        %298 = vmatprep.subr.mxu0 %v232
        %299 = vmatpush1.msra.mxu0 %v231
        %300 = vmatprep.subr.mxu0 %v234
        %301 = vmatpush1.msra.mxu0 %v233
        %302 = vmatprep.subr.mxu0 %v236
        %303 = vmatpush1.msra.mxu0 %v235
        %304 = vmatprep.subr.mxu0 %v238
        %305 = vmatpush1.msra.mxu0 %v237
        %306 = vmatprep.subr.mxu0 %v240
        %307 = vmatpush1.msra.mxu0 %v239
        %308 = vmatprep.subr.mxu0 %v242
        %309 = vmatpush1.msra.mxu0 %v241
        %310 = vmatprep.subr.mxu0 %v244
        %311 = vmatpush1.msra.mxu0 %v243
        %312 = vmatprep.subr.mxu0 %v246
        %313 = vmatpush1.msra.mxu0 %v245
        %314 = vmatprep.subr.mxu0 %v248
        %315 = vmatpush1.msra.mxu0 %v247
        %316 = vmatprep.subr.mxu0 %v250
        %317 = vmatpush1.msra.mxu0 %v249
        %318 = vmatprep.subr.mxu0 %v252
        %319 = vmatpush1.msra.mxu0 %v251
        %320 = vmatprep.subr.mxu0 %v254
        %321 = vmatpush1.msra.mxu0 %v253
        %322 = vmatprep.subr.mxu0 %v256
        %323 = vmatpush1.msra.mxu0 %v255
        %324 = vmatprep.subr.mxu0 %v258
        %325 = vmatpush1.msra.mxu0 %v257
        %326 = vmatprep.subr.mxu0 %v260
        %327 = vmatpush1.msra.mxu0 %v259
        %328 = vmatprep.subr.mxu0 %v262
        %329 = vmatpush1.msra.mxu0 %v261
        %330 = vmatprep.subr.mxu0 %v264
        %331 = vmatpush1.msra.mxu0 %v263
        %332 = vmatprep.subr.mxu0 %v266
        %333 = vmatpush1.msra.mxu0 %v265
        %334 = vmatprep.subr.mxu0 %v268
        %335 = vmatpush1.msra.mxu0 %v267
        %336 = vmatprep.subr.mxu0 %v270
        %337 = vmatpush1.msra.mxu0 %v269
        %338 = vmatprep.subr.mxu0 %v272
        %339 = vmatpush1.msra.mxu0 %v271
        %340 = vmatprep.subr.mxu0 %v274
        %341 = vmatpush1.msra.mxu0 %v273
        %342 = vmatprep.subr.mxu0 %v276
        %343 = vmatpush1.msra.mxu0 %v275
        %344 = vmatprep.subr.mxu0 %v278
        %345 = vmatpush1.msra.mxu0 %v277
        %346 = vmatprep.subr.mxu0 %v280
        %347 = vmatpush1.msra.mxu0 %v279
        %348 = vmatprep.mubr.f32.mxu0 %v282
        %349 = vmatmul.mubr.f32.gmra.mrb[0].mxu0 %v216
        %v350 = vpop.f32.mrb[0].mxu0
        %v351 = vadd.f32 0.0, %v350
        %v352 = vpop.f32.mrb[0].mxu0
        %v353 = vadd.f32 0.0, %v352
        %354 = vdwg.mxu0
        %v355 = vld [vmem:[#allocation7] sm:$0xf]
        %s356 = scalar_lea.vmem [#allocation5], 512
        %v357 = vld [vmem:[%s356] sm:$0xff]
        %v358 = vld [vmem:[%s356 + $0x8] sm:$0xff]
        %v359 = vld [vmem:[%s356 + $0x10] sm:$0xff]
        %v360 = vld [vmem:[%s356 + $0x18] sm:$0xff]
        %v361 = vld [vmem:[%s356 + $0x20] sm:$0xff]
        %v362 = vld [vmem:[%s356 + $0x28] sm:$0xff]
        %v363 = vld [vmem:[%s356 + $0x30] sm:$0xff]
        %v364 = vld [vmem:[%s356 + $0x38] sm:$0xff]
        %v365 = vld [vmem:[%s356 + $0x40] sm:$0xff]
        %v366 = vld [vmem:[%s356 + $0x48] sm:$0xff]
        %v367 = vld [vmem:[%s356 + $0x50] sm:$0xff]
        %v368 = vld [vmem:[%s356 + $0x58] sm:$0xff]
        %v369 = vld [vmem:[%s356 + $0x60] sm:$0xff]
        %v370 = vld [vmem:[%s356 + $0x68] sm:$0xff]
        %v371 = vld [vmem:[%s356 + $0x70] sm:$0xff]
        %v372 = vld [vmem:[%s356 + $0x78] sm:$0xff]
        %v373 = vld [vmem:[%s356 + $0x80] sm:$0xff]
        %v374 = vld [vmem:[%s356 + $0x88] sm:$0xff]
        %v375 = vld [vmem:[%s356 + $0x90] sm:$0xff]
        %v376 = vld [vmem:[%s356 + $0x98] sm:$0xff]
        %v377 = vld [vmem:[%s356 + $0xa0] sm:$0xff]
        %v378 = vld [vmem:[%s356 + $0xa8] sm:$0xff]
        %v379 = vld [vmem:[%s356 + $0xb0] sm:$0xff]
        %v380 = vld [vmem:[%s356 + $0xb8] sm:$0xff]
        %v381 = vld [vmem:[%s356 + $0xc0] sm:$0xff]
        %v382 = vld [vmem:[%s356 + $0xc8] sm:$0xff]
        %v383 = vld [vmem:[%s356 + $0xd0] sm:$0xff]
        %v384 = vld [vmem:[%s356 + $0xd8] sm:$0xff]
        %v385 = vld [vmem:[%s356 + $0xe0] sm:$0xff]
        %v386 = vld [vmem:[%s356 + $0xe8] sm:$0xff]
        %v387 = vld [vmem:[%s356 + $0xf0] sm:$0xff]
        %v388 = vld [vmem:[%s356 + $0xf8] sm:$0xff]
        %v389 = vld [vmem:[%s356 + $0x100] sm:$0xff]
        %v390 = vld [vmem:[%s356 + $0x108] sm:$0xff]
        %v391 = vld [vmem:[%s356 + $0x110] sm:$0xff]
        %v392 = vld [vmem:[%s356 + $0x118] sm:$0xff]
        %v393 = vld [vmem:[%s356 + $0x120] sm:$0xff]
        %v394 = vld [vmem:[%s356 + $0x128] sm:$0xff]
        %v395 = vld [vmem:[%s356 + $0x130] sm:$0xff]
        %v396 = vld [vmem:[%s356 + $0x138] sm:$0xff]
        %v397 = vld [vmem:[%s356 + $0x140] sm:$0xff]
        %v398 = vld [vmem:[%s356 + $0x148] sm:$0xff]
        %v399 = vld [vmem:[%s356 + $0x150] sm:$0xff]
        %v400 = vld [vmem:[%s356 + $0x158] sm:$0xff]
        %v401 = vld [vmem:[%s356 + $0x160] sm:$0xff]
        %v402 = vld [vmem:[%s356 + $0x168] sm:$0xff]
        %v403 = vld [vmem:[%s356 + $0x170] sm:$0xff]
        %v404 = vld [vmem:[%s356 + $0x178] sm:$0xff]
        %v405 = vld [vmem:[%s356 + $0x180] sm:$0xff]
        %v406 = vld [vmem:[%s356 + $0x188] sm:$0xff]
        %v407 = vld [vmem:[%s356 + $0x190] sm:$0xff]
        %v408 = vld [vmem:[%s356 + $0x198] sm:$0xff]
        %v409 = vld [vmem:[%s356 + $0x1a0] sm:$0xff]
        %v410 = vld [vmem:[%s356 + $0x1a8] sm:$0xff]
        %v411 = vld [vmem:[%s356 + $0x1b0] sm:$0xff]
        %v412 = vld [vmem:[%s356 + $0x1b8] sm:$0xff]
        %v413 = vld [vmem:[%s356 + $0x1c0] sm:$0xff]
        %v414 = vld [vmem:[%s356 + $0x1c8] sm:$0xff]
        %v415 = vld [vmem:[%s356 + $0x1d0] sm:$0xff]
        %v416 = vld [vmem:[%s356 + $0x1d8] sm:$0xff]
        %v417 = vld [vmem:[%s356 + $0x1e0] sm:$0xff]
        %v418 = vld [vmem:[%s356 + $0x1e8] sm:$0xff]
        %v419 = vld [vmem:[%s356 + $0x1f0] sm:$0xff]
        %v420 = vld [vmem:[%s356 + $0x1f8] sm:$0xff]
        %421 = vmatprep.subr.mxu0 %v358
        %422 = vmatpush1.msra.mxu0 %v357
        %423 = vmatprep.subr.mxu0 %v360
        %424 = vmatpush1.msra.mxu0 %v359
        %425 = vmatprep.subr.mxu0 %v362
        %426 = vmatpush1.msra.mxu0 %v361
        %427 = vmatprep.subr.mxu0 %v364
        %428 = vmatpush1.msra.mxu0 %v363
        %429 = vmatprep.subr.mxu0 %v366
        %430 = vmatpush1.msra.mxu0 %v365
        %431 = vmatprep.subr.mxu0 %v368
        %432 = vmatpush1.msra.mxu0 %v367
        %433 = vmatprep.subr.mxu0 %v370
        %434 = vmatpush1.msra.mxu0 %v369
        %435 = vmatprep.subr.mxu0 %v372
        %436 = vmatpush1.msra.mxu0 %v371
        %437 = vmatprep.subr.mxu0 %v374
        %438 = vmatpush1.msra.mxu0 %v373
        %439 = vmatprep.subr.mxu0 %v376
        %440 = vmatpush1.msra.mxu0 %v375
        %441 = vmatprep.subr.mxu0 %v378
        %442 = vmatpush1.msra.mxu0 %v377
        %443 = vmatprep.subr.mxu0 %v380
        %444 = vmatpush1.msra.mxu0 %v379
        %445 = vmatprep.subr.mxu0 %v382
        %446 = vmatpush1.msra.mxu0 %v381
        %447 = vmatprep.subr.mxu0 %v384
        %448 = vmatpush1.msra.mxu0 %v383
        %449 = vmatprep.subr.mxu0 %v386
        %450 = vmatpush1.msra.mxu0 %v385
        %451 = vmatprep.subr.mxu0 %v388
        %452 = vmatpush1.msra.mxu0 %v387
        %453 = vmatprep.subr.mxu0 %v390
        %454 = vmatpush1.msra.mxu0 %v389
        %455 = vmatprep.subr.mxu0 %v392
        %456 = vmatpush1.msra.mxu0 %v391
        %457 = vmatprep.subr.mxu0 %v394
        %458 = vmatpush1.msra.mxu0 %v393
        %459 = vmatprep.subr.mxu0 %v396
        %460 = vmatpush1.msra.mxu0 %v395
        %461 = vmatprep.subr.mxu0 %v398
        %462 = vmatpush1.msra.mxu0 %v397
        %463 = vmatprep.subr.mxu0 %v400
        %464 = vmatpush1.msra.mxu0 %v399
        %465 = vmatprep.subr.mxu0 %v402
        %466 = vmatpush1.msra.mxu0 %v401
        %467 = vmatprep.subr.mxu0 %v404
        %468 = vmatpush1.msra.mxu0 %v403
        %469 = vmatprep.subr.mxu0 %v406
        %470 = vmatpush1.msra.mxu0 %v405
        %471 = vmatprep.subr.mxu0 %v408
        %472 = vmatpush1.msra.mxu0 %v407
        %473 = vmatprep.subr.mxu0 %v410
        %474 = vmatpush1.msra.mxu0 %v409
        %475 = vmatprep.subr.mxu0 %v412
        %476 = vmatpush1.msra.mxu0 %v411
        %477 = vmatprep.subr.mxu0 %v414
        %478 = vmatpush1.msra.mxu0 %v413
        %479 = vmatprep.subr.mxu0 %v416
        %480 = vmatpush1.msra.mxu0 %v415
        %481 = vmatprep.subr.mxu0 %v418
        %482 = vmatpush1.msra.mxu0 %v417
        %483 = vmatprep.subr.mxu0 %v420
        %484 = vmatpush1.msra.mxu0 %v419
        %485 = vmatprep.mubr.f32.mxu0 %v282
        %486 = vmatmul.mubr.f32.gmra.mrb[0].mxu0 %v216
        %v487 = vpop.f32.mrb[0].mxu0
        %v488 = vadd.f32 0.0, %v487
        %v489 = vpop.f32.mrb[0].mxu0
        %v490 = vadd.f32 0.0, %v489
        %491 = vdwg.mxu0
        %s492 = scalar_lea.vmem [#allocation7], 4
        %v493 = vld [vmem:[%s492] sm:$0xf]
        %vm494 = vcmask 31744
        %v496 = vsel %vm494, %v493, 0
        %vm498 = vcmask 1043456
        %v500 = vsel %vm498, %v488, 0
        %v503 = vsel %vm498, %v490, 0
        %505 = vmatprep.subr.mxu0 %v503
        %506 = vmatpush1.msra.mxu0 %v500
        %507 = vmatprep.subr.mxu0 0.0
        %508 = vmatpush1.msra.mxu0 0.0
        %509 = vmatprep.subr.mxu0 0.0
        %510 = vmatpush1.msra.mxu0 0.0
        %511 = vmatprep.subr.mxu0 0.0
        %512 = vmatpush1.msra.mxu0 0.0
        %513 = vmatprep.subr.mxu0 0.0
        %514 = vmatpush1.msra.mxu0 0.0
        %515 = vmatprep.subr.mxu0 0.0
        %516 = vmatpush1.msra.mxu0 0.0
        %517 = vmatprep.subr.mxu0 0.0
        %518 = vmatpush1.msra.mxu0 0.0
        %519 = vmatprep.subr.mxu0 0.0
        %520 = vmatpush1.msra.mxu0 0.0
        %521 = vmatprep.subr.mxu0 0.0
        %522 = vmatpush1.msra.mxu0 0.0
        %523 = vmatprep.subr.mxu0 0.0
        %524 = vmatpush1.msra.mxu0 0.0
        %525 = vmatprep.subr.mxu0 0.0
        %526 = vmatpush1.msra.mxu0 0.0
        %527 = vmatprep.subr.mxu0 0.0
        %528 = vmatpush1.msra.mxu0 0.0
        %529 = vmatprep.subr.mxu0 0.0
        %530 = vmatpush1.msra.mxu0 0.0
        %531 = vmatprep.subr.mxu0 0.0
        %532 = vmatpush1.msra.mxu0 0.0
        %533 = vmatprep.subr.mxu0 0.0
        %534 = vmatpush1.msra.mxu0 0.0
        %535 = vmatprep.subr.mxu0 0.0
        %536 = vmatpush1.msra.mxu0 0.0
        %537 = vmatprep.subr.mxu0 0.0
        %538 = vmatpush1.msra.mxu0 0.0
        %539 = vmatprep.subr.mxu0 0.0
        %540 = vmatpush1.msra.mxu0 0.0
        %541 = vmatprep.subr.mxu0 0.0
        %542 = vmatpush1.msra.mxu0 0.0
        %543 = vmatprep.subr.mxu0 0.0
        %544 = vmatpush1.msra.mxu0 0.0
        %545 = vmatprep.subr.mxu0 0.0
        %546 = vmatpush1.msra.mxu0 0.0
        %547 = vmatprep.subr.mxu0 0.0
        %548 = vmatpush1.msra.mxu0 0.0
        %549 = vmatprep.subr.mxu0 0.0
        %550 = vmatpush1.msra.mxu0 0.0
        %551 = vmatprep.subr.mxu0 0.0
        %552 = vmatpush1.msra.mxu0 0.0
        %553 = vmatprep.subr.mxu0 0.0
        %554 = vmatpush1.msra.mxu0 0.0
        %555 = vmatprep.subr.mxu0 0.0
        %556 = vmatpush1.msra.mxu0 0.0
        %557 = vmatprep.subr.mxu0 0.0
        %558 = vmatpush1.msra.mxu0 0.0
        %559 = vmatprep.subr.mxu0 0.0
        %560 = vmatpush1.msra.mxu0 0.0
        %561 = vmatprep.subr.mxu0 0.0
        %562 = vmatpush1.msra.mxu0 0.0
        %563 = vmatprep.subr.mxu0 0.0
        %564 = vmatpush1.msra.mxu0 0.0
        %565 = vmatprep.subr.mxu0 0.0
        %566 = vmatpush1.msra.mxu0 0.0
        %567 = vmatprep.subr.mxu0 0.0
        %568 = vmatpush1.msra.mxu0 0.0
        %569 = vmatprep.mubr.f32.mxu0 0.0
        %570 = vmatmul.mubr.f32.gmra.mrb[0].mxu0 %v496
        %v571 = vpop.f32.mrb[0].mxu0
        %v572 = vadd.f32 0.0, %v571
        %v573 = vpop.f32.mrb[0].mxu0
        %v574 = vadd.f32 0.0, %v573
        %575 = vdwg.mxu0
        %v577 = vsel %vm494, %v355, 0
        %v580 = vsel %vm498, %v351, 0
        %v583 = vsel %vm498, %v353, 0
        %585 = vmatprep.subr.mxu0 %v583
        %586 = vmatpush1.msra.mxu0 %v580
        %587 = vmatprep.subr.mxu0 0.0
        %588 = vmatpush1.msra.mxu0 0.0
        %589 = vmatprep.subr.mxu0 0.0
        %590 = vmatpush1.msra.mxu0 0.0
        %591 = vmatprep.subr.mxu0 0.0
        %592 = vmatpush1.msra.mxu0 0.0
        %593 = vmatprep.subr.mxu0 0.0
        %594 = vmatpush1.msra.mxu0 0.0
        %595 = vmatprep.subr.mxu0 0.0
        %596 = vmatpush1.msra.mxu0 0.0
        %597 = vmatprep.subr.mxu0 0.0
        %598 = vmatpush1.msra.mxu0 0.0
        %599 = vmatprep.subr.mxu0 0.0
        %600 = vmatpush1.msra.mxu0 0.0
        %601 = vmatprep.subr.mxu0 0.0
        %602 = vmatpush1.msra.mxu0 0.0
        %603 = vmatprep.subr.mxu0 0.0
        %604 = vmatpush1.msra.mxu0 0.0
        %605 = vmatprep.subr.mxu0 0.0
        %606 = vmatpush1.msra.mxu0 0.0
        %607 = vmatprep.subr.mxu0 0.0
        %608 = vmatpush1.msra.mxu0 0.0
        %609 = vmatprep.subr.mxu0 0.0
        %610 = vmatpush1.msra.mxu0 0.0
        %611 = vmatprep.subr.mxu0 0.0
        %612 = vmatpush1.msra.mxu0 0.0
        %613 = vmatprep.subr.mxu0 0.0
        %614 = vmatpush1.msra.mxu0 0.0
        %615 = vmatprep.subr.mxu0 0.0
        %616 = vmatpush1.msra.mxu0 0.0
        %617 = vmatprep.subr.mxu0 0.0
        %618 = vmatpush1.msra.mxu0 0.0
        %619 = vmatprep.subr.mxu0 0.0
        %620 = vmatpush1.msra.mxu0 0.0
        %621 = vmatprep.subr.mxu0 0.0
        %622 = vmatpush1.msra.mxu0 0.0
        %623 = vmatprep.subr.mxu0 0.0
        %624 = vmatpush1.msra.mxu0 0.0
        %625 = vmatprep.subr.mxu0 0.0
        %626 = vmatpush1.msra.mxu0 0.0
        %627 = vmatprep.subr.mxu0 0.0
        %628 = vmatpush1.msra.mxu0 0.0
        %629 = vmatprep.subr.mxu0 0.0
        %630 = vmatpush1.msra.mxu0 0.0
        %631 = vmatprep.subr.mxu0 0.0
        %632 = vmatpush1.msra.mxu0 0.0
        %633 = vmatprep.subr.mxu0 0.0
        %634 = vmatpush1.msra.mxu0 0.0
        %635 = vmatprep.subr.mxu0 0.0
        %636 = vmatpush1.msra.mxu0 0.0
        %637 = vmatprep.subr.mxu0 0.0
        %638 = vmatpush1.msra.mxu0 0.0
        %639 = vmatprep.subr.mxu0 0.0
        %640 = vmatpush1.msra.mxu0 0.0
        %641 = vmatprep.subr.mxu0 0.0
        %642 = vmatpush1.msra.mxu0 0.0
        %643 = vmatprep.subr.mxu0 0.0
        %644 = vmatpush1.msra.mxu0 0.0
        %645 = vmatprep.subr.mxu0 0.0
        %646 = vmatpush1.msra.mxu0 0.0
        %647 = vmatprep.subr.mxu0 0.0
        %648 = vmatpush1.msra.mxu0 0.0
        %649 = vmatprep.mubr.f32.mxu0 0.0
        %650 = vmatmul.mubr.f32.gmra.mrb[0].mxu0 %v577
        %v651 = vpop.f32.mrb[0].mxu0
        %v652 = vadd.f32 %v572, %v651
        %v653 = vpop.f32.mrb[0].mxu0
        %v654 = vadd.f32 %v574, %v653
        %655 = vdwg.mxu0
        %s656 = scalar_lea.vmem [#allocation5], 1024
        %v657 = vld [vmem:[%s656] sm:$0xff]
        %v658 = vld [vmem:[%s656 + $0x8] sm:$0xff]
        %v659 = vld [vmem:[%s656 + $0x10] sm:$0xff]
        %v660 = vld [vmem:[%s656 + $0x18] sm:$0xff]
        %v661 = vld [vmem:[%s656 + $0x20] sm:$0xff]
        %v662 = vld [vmem:[%s656 + $0x28] sm:$0xff]
        %v663 = vld [vmem:[%s656 + $0x30] sm:$0xff]
        %v664 = vld [vmem:[%s656 + $0x38] sm:$0xff]
        %v665 = vld [vmem:[%s656 + $0x40] sm:$0xff]
        %v666 = vld [vmem:[%s656 + $0x48] sm:$0xff]
        %v667 = vld [vmem:[%s656 + $0x50] sm:$0xff]
        %v668 = vld [vmem:[%s656 + $0x58] sm:$0xff]
        %v669 = vld [vmem:[%s656 + $0x60] sm:$0xff]
        %v670 = vld [vmem:[%s656 + $0x68] sm:$0xff]
        %v671 = vld [vmem:[%s656 + $0x70] sm:$0xff]
        %v672 = vld [vmem:[%s656 + $0x78] sm:$0xff]
        %v673 = vld [vmem:[%s656 + $0x80] sm:$0xff]
        %v674 = vld [vmem:[%s656 + $0x88] sm:$0xff]
        %v675 = vld [vmem:[%s656 + $0x90] sm:$0xff]
        %v676 = vld [vmem:[%s656 + $0x98] sm:$0xff]
        %v677 = vld [vmem:[%s656 + $0xa0] sm:$0xff]
        %v678 = vld [vmem:[%s656 + $0xa8] sm:$0xff]
        %v679 = vld [vmem:[%s656 + $0xb0] sm:$0xff]
        %v680 = vld [vmem:[%s656 + $0xb8] sm:$0xff]
        %v681 = vld [vmem:[%s656 + $0xc0] sm:$0xff]
        %v682 = vld [vmem:[%s656 + $0xc8] sm:$0xff]
        %v683 = vld [vmem:[%s656 + $0xd0] sm:$0xff]
        %v684 = vld [vmem:[%s656 + $0xd8] sm:$0xff]
        %v685 = vld [vmem:[%s656 + $0xe0] sm:$0xff]
        %v686 = vld [vmem:[%s656 + $0xe8] sm:$0xff]
        %v687 = vld [vmem:[%s656 + $0xf0] sm:$0xff]
        %v688 = vld [vmem:[%s656 + $0xf8] sm:$0xff]
        %v689 = vld [vmem:[%s656 + $0x100] sm:$0xff]
        %v690 = vld [vmem:[%s656 + $0x108] sm:$0xff]
        %v691 = vld [vmem:[%s656 + $0x110] sm:$0xff]
        %v692 = vld [vmem:[%s656 + $0x118] sm:$0xff]
        %v693 = vld [vmem:[%s656 + $0x120] sm:$0xff]
        %v694 = vld [vmem:[%s656 + $0x128] sm:$0xff]
        %v695 = vld [vmem:[%s656 + $0x130] sm:$0xff]
        %v696 = vld [vmem:[%s656 + $0x138] sm:$0xff]
        %v697 = vld [vmem:[%s656 + $0x140] sm:$0xff]
        %v698 = vld [vmem:[%s656 + $0x148] sm:$0xff]
        %v699 = vld [vmem:[%s656 + $0x150] sm:$0xff]
        %v700 = vld [vmem:[%s656 + $0x158] sm:$0xff]
        %v701 = vld [vmem:[%s656 + $0x160] sm:$0xff]
        %v702 = vld [vmem:[%s656 + $0x168] sm:$0xff]
        %v703 = vld [vmem:[%s656 + $0x170] sm:$0xff]
        %v704 = vld [vmem:[%s656 + $0x178] sm:$0xff]
        %v705 = vld [vmem:[%s656 + $0x180] sm:$0xff]
        %v706 = vld [vmem:[%s656 + $0x188] sm:$0xff]
        %v707 = vld [vmem:[%s656 + $0x190] sm:$0xff]
        %v708 = vld [vmem:[%s656 + $0x198] sm:$0xff]
        %v709 = vld [vmem:[%s656 + $0x1a0] sm:$0xff]
        %v710 = vld [vmem:[%s656 + $0x1a8] sm:$0xff]
        %v711 = vld [vmem:[%s656 + $0x1b0] sm:$0xff]
        %v712 = vld [vmem:[%s656 + $0x1b8] sm:$0xff]
        %v713 = vld [vmem:[%s656 + $0x1c0] sm:$0xff]
        %v714 = vld [vmem:[%s656 + $0x1c8] sm:$0xff]
        %v715 = vld [vmem:[%s656 + $0x1d0] sm:$0xff]
        %v716 = vld [vmem:[%s656 + $0x1d8] sm:$0xff]
        %v717 = vld [vmem:[%s656 + $0x1e0] sm:$0xff]
        %v718 = vld [vmem:[%s656 + $0x1e8] sm:$0xff]
        %v719 = vld [vmem:[%s656 + $0x1f0] sm:$0xff]
        %v720 = vld [vmem:[%s656 + $0x1f8] sm:$0xff]
        %721 = vmatprep.subr.mxu0 %v658
        %722 = vmatpush1.msra.mxu0 %v657
        %723 = vmatprep.subr.mxu0 %v660
        %724 = vmatpush1.msra.mxu0 %v659
        %725 = vmatprep.subr.mxu0 %v662
        %726 = vmatpush1.msra.mxu0 %v661
        %727 = vmatprep.subr.mxu0 %v664
        %728 = vmatpush1.msra.mxu0 %v663
        %729 = vmatprep.subr.mxu0 %v666
        %730 = vmatpush1.msra.mxu0 %v665
        %731 = vmatprep.subr.mxu0 %v668
        %732 = vmatpush1.msra.mxu0 %v667
        %733 = vmatprep.subr.mxu0 %v670
        %734 = vmatpush1.msra.mxu0 %v669
        %735 = vmatprep.subr.mxu0 %v672
        %736 = vmatpush1.msra.mxu0 %v671
        %737 = vmatprep.subr.mxu0 %v674
        %738 = vmatpush1.msra.mxu0 %v673
        %739 = vmatprep.subr.mxu0 %v676
        %740 = vmatpush1.msra.mxu0 %v675
        %741 = vmatprep.subr.mxu0 %v678
        %742 = vmatpush1.msra.mxu0 %v677
        %743 = vmatprep.subr.mxu0 %v680
        %744 = vmatpush1.msra.mxu0 %v679
        %745 = vmatprep.subr.mxu0 %v682
        %746 = vmatpush1.msra.mxu0 %v681
        %747 = vmatprep.subr.mxu0 %v684
        %748 = vmatpush1.msra.mxu0 %v683
        %749 = vmatprep.subr.mxu0 %v686
        %750 = vmatpush1.msra.mxu0 %v685
        %751 = vmatprep.subr.mxu0 %v688
        %752 = vmatpush1.msra.mxu0 %v687
        %753 = vmatprep.subr.mxu0 %v690
        %754 = vmatpush1.msra.mxu0 %v689
        %755 = vmatprep.subr.mxu0 %v692
        %756 = vmatpush1.msra.mxu0 %v691
        %757 = vmatprep.subr.mxu0 %v694
        %758 = vmatpush1.msra.mxu0 %v693
        %759 = vmatprep.subr.mxu0 %v696
        %760 = vmatpush1.msra.mxu0 %v695
        %761 = vmatprep.subr.mxu0 %v698
        %762 = vmatpush1.msra.mxu0 %v697
        %763 = vmatprep.subr.mxu0 %v700
        %764 = vmatpush1.msra.mxu0 %v699
        %765 = vmatprep.subr.mxu0 %v702
        %766 = vmatpush1.msra.mxu0 %v701
        %767 = vmatprep.subr.mxu0 %v704
        %768 = vmatpush1.msra.mxu0 %v703
        %769 = vmatprep.subr.mxu0 %v706
        %770 = vmatpush1.msra.mxu0 %v705
        %771 = vmatprep.subr.mxu0 %v708
        %772 = vmatpush1.msra.mxu0 %v707
        %773 = vmatprep.subr.mxu0 %v710
        %774 = vmatpush1.msra.mxu0 %v709
        %775 = vmatprep.subr.mxu0 %v712
        %776 = vmatpush1.msra.mxu0 %v711
        %777 = vmatprep.subr.mxu0 %v714
        %778 = vmatpush1.msra.mxu0 %v713
        %779 = vmatprep.subr.mxu0 %v716
        %780 = vmatpush1.msra.mxu0 %v715
        %781 = vmatprep.subr.mxu0 %v718
        %782 = vmatpush1.msra.mxu0 %v717
        %783 = vmatprep.subr.mxu0 %v720
        %784 = vmatpush1.msra.mxu0 %v719
        %785 = vmatprep.mubr.f32.mxu0 %v282
        %786 = vmatmul.mubr.f32.gmra.mrb[0].mxu0 %v216
        %v787 = vpop.f32.mrb[0].mxu0
        %v788 = vadd.f32 0.0, %v787
        %v789 = vpop.f32.mrb[0].mxu0
        %v790 = vadd.f32 0.0, %v789
        %791 = vdwg.mxu0
        %s792 = scalar_lea.vmem [#allocation7], 8
        %v793 = vld [vmem:[%s792] sm:$0xf]
        %v795 = vsel %vm494, %v793, 0
        %v798 = vsel %vm498, %v788, 0
        %v801 = vsel %vm498, %v790, 0
        %803 = vmatprep.subr.mxu0 %v801
        %804 = vmatpush1.msra.mxu0 %v798
        %805 = vmatprep.subr.mxu0 0.0
        %806 = vmatpush1.msra.mxu0 0.0
        %807 = vmatprep.subr.mxu0 0.0
        %808 = vmatpush1.msra.mxu0 0.0
        %809 = vmatprep.subr.mxu0 0.0
        %810 = vmatpush1.msra.mxu0 0.0
        %811 = vmatprep.subr.mxu0 0.0
        %812 = vmatpush1.msra.mxu0 0.0
        %813 = vmatprep.subr.mxu0 0.0
        %814 = vmatpush1.msra.mxu0 0.0
        %815 = vmatprep.subr.mxu0 0.0
        %816 = vmatpush1.msra.mxu0 0.0
        %817 = vmatprep.subr.mxu0 0.0
        %818 = vmatpush1.msra.mxu0 0.0
        %819 = vmatprep.subr.mxu0 0.0
        %820 = vmatpush1.msra.mxu0 0.0
        %821 = vmatprep.subr.mxu0 0.0
        %822 = vmatpush1.msra.mxu0 0.0
        %823 = vmatprep.subr.mxu0 0.0
        %824 = vmatpush1.msra.mxu0 0.0
        %825 = vmatprep.subr.mxu0 0.0
        %826 = vmatpush1.msra.mxu0 0.0
        %827 = vmatprep.subr.mxu0 0.0
        %828 = vmatpush1.msra.mxu0 0.0
        %829 = vmatprep.subr.mxu0 0.0
        %830 = vmatpush1.msra.mxu0 0.0
        %831 = vmatprep.subr.mxu0 0.0
        %832 = vmatpush1.msra.mxu0 0.0
        %833 = vmatprep.subr.mxu0 0.0
        %834 = vmatpush1.msra.mxu0 0.0
        %835 = vmatprep.subr.mxu0 0.0
        %836 = vmatpush1.msra.mxu0 0.0
        %837 = vmatprep.subr.mxu0 0.0
        %838 = vmatpush1.msra.mxu0 0.0
        %839 = vmatprep.subr.mxu0 0.0
        %840 = vmatpush1.msra.mxu0 0.0
        %841 = vmatprep.subr.mxu0 0.0
        %842 = vmatpush1.msra.mxu0 0.0
        %843 = vmatprep.subr.mxu0 0.0
        %844 = vmatpush1.msra.mxu0 0.0
        %845 = vmatprep.subr.mxu0 0.0
        %846 = vmatpush1.msra.mxu0 0.0
        %847 = vmatprep.subr.mxu0 0.0
        %848 = vmatpush1.msra.mxu0 0.0
        %849 = vmatprep.subr.mxu0 0.0
        %850 = vmatpush1.msra.mxu0 0.0
        %851 = vmatprep.subr.mxu0 0.0
        %852 = vmatpush1.msra.mxu0 0.0
        %853 = vmatprep.subr.mxu0 0.0
        %854 = vmatpush1.msra.mxu0 0.0
        %855 = vmatprep.subr.mxu0 0.0
        %856 = vmatpush1.msra.mxu0 0.0
        %857 = vmatprep.subr.mxu0 0.0
        %858 = vmatpush1.msra.mxu0 0.0
        %859 = vmatprep.subr.mxu0 0.0
        %860 = vmatpush1.msra.mxu0 0.0
        %861 = vmatprep.subr.mxu0 0.0
        %862 = vmatpush1.msra.mxu0 0.0
        %863 = vmatprep.subr.mxu0 0.0
        %864 = vmatpush1.msra.mxu0 0.0
        %865 = vmatprep.subr.mxu0 0.0
        %866 = vmatpush1.msra.mxu0 0.0
        %867 = vmatprep.mubr.f32.mxu0 0.0
        %868 = vmatmul.mubr.f32.gmra.mrb[0].mxu0 %v795
        %v869 = vpop.f32.mrb[0].mxu0
        %v870 = vadd.f32 0.0, %v869
        %v871 = vpop.f32.mrb[0].mxu0
        %v872 = vadd.f32 0.0, %v871
        %873 = vdwg.mxu0
        %v874 = vadd.f32 %v652, %v870
        %v875 = vadd.f32 %v654, %v872
        %v878 = vcombine.low %v874, %v875
        %880 = vst [vmem:[%s215] sm:$0xff] %v878
        %s881 = sand.u32 %s97, 1
        %s882 = scalar_lea.sflag [#allocation4], %s881
        %s883 = sand.u32 %s97, 1
        %s884 = smul.addr %s883, 8
        %s885 = scalar_lea.vmem [#allocation8], %s884
        // Predicated region
        $region45: #{tpu_custom_call.1} parent=31 // pred_check
          %p886 = pneg %p107
        $region46: #{tpu_custom_call.1} parent=31 // pred_check_branch
          %888 = sbr.rel (%p886) target = $region48
        $region47: #{tpu_custom_call.1} parent=31 // pred_region
          %s890 = ssub.s32 128, 128
          %891 = vsyncadd %s882, %s890
          %s892 = smul.addr %s21, 2
          %s893 = smul.addr %s892, 64
          %s894 = scalar_lea.hbm %s3, %s893
          %s896 = sshll.u32 %s885, 4
          %s897 = int_to_ptr.vmem [resolvable:$true] %s896
          %899 = dma.vmem_to_hbm [thread:$0]  %s897, 128, %s894, %s882
        $region48: #{tpu_custom_call.1} parent=31 // pred_fallthru
          _
      $region32: #{tpu_custom_call.1} parent=5 // pred_fallthru
        _
      %p900 = scmp.le.s32.totalorder 2, %s16
      // Predicated region
      $region49: #{tpu_custom_call.1} parent=5 // pred_check
        %p901 = pneg %p900
      $region50: #{tpu_custom_call.1} parent=5 // pred_check_branch
        %903 = sbr.rel (%p901) target = $region52
      $region51: #{tpu_custom_call.1} parent=5 // pred_region
        %s904 = ssub.s32 %s16, 2
        // Predicated region
        $region53: #{tpu_custom_call.1} parent=51 // pred_check
          %p905 = pneg %p113
        $region54: #{tpu_custom_call.1} parent=51 // pred_check_branch
          %907 = sbr.rel (%p905) target = $region56
        $region55: #{tpu_custom_call.1} parent=51 // pred_region
          %s908 = sand.u32 %s98, 1
          %s909 = scalar_lea.sflag [#allocation4], %s908
          %s910 = sand.u32 %s98, 1
          %s911 = smul.addr %s910, 8
          %s912 = scalar_lea.vmem [#allocation8], %s911
          %913 = dma.done %s909, 128
        $region56: #{tpu_custom_call.1} parent=51 // pred_fallthru
          _
      $region52: #{tpu_custom_call.1} parent=5 // pred_fallthru
        _
    $region6: #{tpu_custom_call.1} parent=1 // loop_footer
      %s20 = sadd.s32 1, %s16
    $region7: #{tpu_custom_call.1} parent=1 // loop_footer_branch
      %15 = sbr.rel target = $region3
    $region8: #{tpu_custom_call.1} parent=1 // loop_exit
      _
    %914 = vsyncpa [#allocation3], 1
    %s915 = scalar_lea.sflag [#allocation3], 1
    %916 = vsyncpa %s915, 1
    %917 = vsyncpa [#allocation6], 1
    %918 = vsyncpa [#allocation4], 1
    %s919 = scalar_lea.sflag [#allocation4], 1
    %920 = vsyncpa %s919, 1

</llo_original>
